<compile_context>
chip_gen: v6e
topology: v6e:2x2x1
jax: 0.10.0
libtpu: 0.0.40
codegen_flags: <defaults>
</compile_context>

<pallas_src>
import jax
import jax.numpy as jnp
from jax.experimental import pallas as pl
from jax.experimental.pallas import tpu as pltpu


LANE = 128          # lane width: label dim padded to a multiple of this
TILE_NODES = 128    # node-axis tile (rows per segment-sum matmul step)
TILE_GRAPHS = 8     # graph/batch tile (MXU "M" dim; multiple of 8 sublanes)


def _round_up(x, m):
    return (x + m - 1) // m * m


def _graph_classifier_kernel(seg_ref, x_ref, w_ref, b_ref, invn_ref, o_ref, acc_ref):
    """Segment-mean readout + linear head for one (batch-tile, node-tile) grid cell.

    seg_ref : [TILE_GRAPHS, TILE_NODES]  one-hot graph membership (f32)
    x_ref   : [TILE_NODES, D]            node features
    w_ref   : [D, L_pad]                 classifier weight (lane-padded)
    b_ref   : [1, L_pad]                 classifier bias   (lane-padded)
    invn_ref: [TILE_GRAPHS, 1]           1 / num_nodes per graph (0 for pad graphs)
    o_ref   : [TILE_GRAPHS, L_pad]       logits (lane-dense output slab)
    acc_ref : [TILE_GRAPHS, D] f32       running per-graph feature-sum accumulator
    """
    n_idx = pl.program_id(1)

    @pl.when(n_idx == 0)
    def _():
        acc_ref[...] = jnp.zeros_like(acc_ref)

    # Segment-sum expressed as an MXU matmul (keeps the XLU/VALU free):
    # onehot[TB, TN] @ x[TN, D] -> partial per-graph feature sums.
    acc_ref[...] += jnp.dot(
        seg_ref[...],
        x_ref[...].astype(jnp.float32),
        preferred_element_type=jnp.float32,
    )

    @pl.when(n_idx == pl.num_programs(1) - 1)
    def _():
        pooled = acc_ref[...] * invn_ref[...]                      # mean readout [TB, D]
        logits = jnp.dot(pooled, w_ref[...].astype(jnp.float32),
                         preferred_element_type=jnp.float32)       # [TB, L_pad]
        o_ref[...] = (logits + b_ref[...].astype(jnp.float32)).astype(o_ref.dtype)


def graph_classifier_forward(node_attr, graph_ids, num_graphs, w, b,
                             *, tile_nodes=TILE_NODES, tile_graphs=TILE_GRAPHS):
    """Batched mean-pool over each graph's nodes, then linear head -> [num_graphs, L]."""
    n_total, d = node_attr.shape
    l = w.shape[1]

    n_pad = _round_up(max(n_total, tile_nodes), tile_nodes)
    b_pad = _round_up(max(num_graphs, tile_graphs), tile_graphs)
    l_pad = _round_up(max(l, LANE), LANE)

    # Pad nodes with zero features and graph id -1 (excluded from every segment).
    x_p = jnp.zeros((n_pad, d), node_attr.dtype).at[:n_total].set(node_attr)
    gid_p = jnp.full((n_pad,), -1, jnp.int32).at[:n_total].set(graph_ids.astype(jnp.int32))

    # One-hot membership matrix: turns the ragged segment-sum into an MXU matmul.
    onehot = (gid_p[None, :] == jnp.arange(b_pad, dtype=jnp.int32)[:, None]).astype(jnp.float32)
    counts = jnp.sum(onehot, axis=1, keepdims=True)
    inv_counts = jnp.where(counts > 0, 1.0 / counts, 0.0).astype(jnp.float32)

    # Lane-pad the classifier parameters to a 128-wide output slab.
    w_p = jnp.zeros((d, l_pad), jnp.float32).at[:, :l].set(w.astype(jnp.float32))
    b_p = jnp.zeros((1, l_pad), jnp.float32).at[:, :l].set(b.astype(jnp.float32))

    grid = (b_pad // tile_graphs, n_pad // tile_nodes)

    cost = pl.CostEstimate(
        flops=2 * b_pad * n_pad * d + 2 * b_pad * d * l_pad,
        transcendentals=0,
        bytes_accessed=4 * (b_pad * n_pad + n_pad * d + d * l_pad + l_pad
                            + b_pad + b_pad * l_pad),
    )

    out = pl.pallas_call(
        _graph_classifier_kernel,
        out_shape=jax.ShapeDtypeStruct((b_pad, l_pad), jnp.float32),
        grid_spec=pltpu.PrefetchScalarGridSpec(
            num_scalar_prefetch=0,
            grid=grid,
            in_specs=[
                pl.BlockSpec((tile_graphs, tile_nodes), lambda bi, ni: (bi, ni)),  # onehot
                pl.BlockSpec((tile_nodes, d), lambda bi, ni: (ni, 0)),             # node feats
                pl.BlockSpec((d, l_pad), lambda bi, ni: (0, 0)),                   # W (padded)
                pl.BlockSpec((1, l_pad), lambda bi, ni: (0, 0)),                   # bias
                pl.BlockSpec((tile_graphs, 1), lambda bi, ni: (bi, 0)),            # 1/N per graph
            ],
            out_specs=pl.BlockSpec((tile_graphs, l_pad), lambda bi, ni: (bi, 0)),
            scratch_shapes=[pltpu.VMEM((tile_graphs, d), jnp.float32)],
        ),
        compiler_params=pltpu.CompilerParams(
            dimension_semantics=("parallel", "arbitrary"),  # batch axis -> megacore
            vmem_limit_bytes=32 * 1024 * 1024,              # safe on v5e/v6e/v7x
        ),
        cost_estimate=cost,
    )(onehot, x_p, w_p, b_p, inv_counts)

    return out[:num_graphs, :l]


if __name__ == "__main__":
    # 8 ragged graphs packed DGL-batch style: 139 total nodes, 32 feature maps, 8 labels.
    input_dim = 32
    number_of_labels = 8
    nodes_per_graph = [13, 7, 21, 16, 9, 30, 25, 18]
    num_graphs = len(nodes_per_graph)
    n_total = sum(nodes_per_graph)

    key = jax.random.PRNGKey(0)
    k_x, k_w, k_b = jax.random.split(key, 3)

    # graph.ndata['node_attr'] equivalent for the batched graph
    node_attr = jax.random.normal(k_x, (n_total, input_dim), dtype=jnp.float32)
    graph_ids = jnp.repeat(jnp.arange(num_graphs), jnp.array(nodes_per_graph),
                           total_repeat_length=n_total)
    # deterministic Linear(input_dim, number_of_labels) parameters
    w = jax.random.normal(k_w, (input_dim, number_of_labels), dtype=jnp.float32) * 0.1
    b = jax.random.normal(k_b, (1, number_of_labels), dtype=jnp.float32) * 0.01

    logits = graph_classifier_forward(node_attr, graph_ids, num_graphs, w, b)
    logits = jax.block_until_ready(logits)

    # pure-JAX reference: per-graph mean readout + linear head
    counts = jnp.array(nodes_per_graph, jnp.float32)[:, None]
    pooled_ref = jax.ops.segment_sum(node_attr, graph_ids, num_segments=num_graphs) / counts
    ref = pooled_ref @ w + b

    assert logits.shape == (num_graphs, number_of_labels)
    assert jnp.allclose(logits, ref, atol=1e-4, rtol=1e-4), (
        f"max abs err {jnp.max(jnp.abs(logits - ref))}")

    print("KERNEL_OK")
</pallas_src>

<mosaic_0001>
module attributes {stable_mosaic.version = 11 : i64} {
  func.func @_graph_classifier_kernel(%arg0: i32, %arg1: i32, %arg2: memref<8x128xf32, #tpu.memory_space<vmem>>, %arg3: memref<128x32xf32, #tpu.memory_space<vmem>>, %arg4: memref<32x128xf32, #tpu.memory_space<vmem>>, %arg5: memref<1x128xf32, #tpu.memory_space<vmem>>, %arg6: memref<8x1xf32, #tpu.memory_space<vmem>>, %arg7: memref<8x128xf32, #tpu.memory_space<vmem>>, %arg8: memref<8x32xf32, #tpu.memory_space<vmem>>) attributes {dimension_semantics = [#tpu.dimension_semantics<parallel>, #tpu.dimension_semantics<arbitrary>], iteration_bounds = array<i64: 1, 2>, scalar_prefetch = 0 : i64, scratch_operands = 1 : i64, tpu.core_type = #tpu.core_type<tc>, window_params = [{transform_indices = @transform_0, window_bounds = array<i64: 8, 128>}, {transform_indices = @transform_1, window_bounds = array<i64: 128, 32>}, {pipeline_mode = #tpu.pipeline_mode<synchronous>, transform_indices = @transform_2, window_bounds = array<i64: 32, 128>}, {pipeline_mode = #tpu.pipeline_mode<synchronous>, transform_indices = @transform_3, window_bounds = array<i64: 1, 128>}, {transform_indices = @transform_4, window_bounds = array<i64: 8, 1>}, {transform_indices = @transform_5, window_bounds = array<i64: 8, 128>}]} {
    %c0_i32 = arith.constant 0 : i32
    %0 = arith.cmpi eq, %arg1, %c0_i32 : i32
    %1 = arith.extui %0 : i1 to i32
    %c0_i32_0 = arith.constant 0 : i32
    %2 = arith.cmpi ne, %1, %c0_i32_0 : i32
    scf.if %2 {
      %cst_9 = arith.constant 0.000000e+00 : f32
      %12 = vector.broadcast %cst_9 : f32 to vector<8x32xf32>
      %c0_10 = arith.constant 0 : index
      %c0_11 = arith.constant 0 : index
      %13 = vector.load %arg8[%c0_10, %c0_11] : memref<8x32xf32, #tpu.memory_space<vmem>>, vector<8x32xf32>
      tpu.vector_store %arg8[%c0_10, %c0_11], %12 {strides = array<i32>} : memref<8x32xf32, #tpu.memory_space<vmem>>, vector<8x32xf32>,
    } else {
    }
    %c0 = arith.constant 0 : index
    %c0_1 = arith.constant 0 : index
    %3 = vector.load %arg8[%c0, %c0_1] : memref<8x32xf32, #tpu.memory_space<vmem>>, vector<8x32xf32>
    %c0_2 = arith.constant 0 : index
    %c0_3 = arith.constant 0 : index
    %4 = vector.load %arg2[%c0_2, %c0_3] : memref<8x128xf32, #tpu.memory_space<vmem>>, vector<8x128xf32>
    %c0_4 = arith.constant 0 : index
    %c0_5 = arith.constant 0 : index
    %5 = vector.load %arg3[%c0_4, %c0_5] : memref<128x32xf32, #tpu.memory_space<vmem>>, vector<128x32xf32>
    %cst = arith.constant dense<0.000000e+00> : vector<8x32xf32>
    %6 = tpu.matmul %4, %5, %cst {dimension_numbers = #tpu.dot_dimension_numbers<[1], [0], [0], [1], [0, 0, 1, 1], [], []>} : vector<8x128xf32>, vector<128x32xf32>, vector<8x32xf32> -> vector<8x32xf32>
    %7 = arith.addf %3, %6 : vector<8x32xf32>
    %c0_6 = arith.constant 0 : index
    %c0_7 = arith.constant 0 : index
    %8 = vector.load %arg8[%c0_6, %c0_7] : memref<8x32xf32, #tpu.memory_space<vmem>>, vector<8x32xf32>
    tpu.vector_store %arg8[%c0_6, %c0_7], %7 {strides = array<i32>} : memref<8x32xf32, #tpu.memory_space<vmem>>, vector<8x32xf32>,
    %c1_i32 = arith.constant 1 : i32
    %9 = arith.cmpi eq, %arg1, %c1_i32 : i32
    %10 = arith.extui %9 : i1 to i32
    %c0_i32_8 = arith.constant 0 : i32
    %11 = arith.cmpi ne, %10, %c0_i32_8 : i32
    scf.if %11 {
      %c0_9 = arith.constant 0 : index
      %c0_10 = arith.constant 0 : index
      %12 = vector.load %arg8[%c0_9, %c0_10] : memref<8x32xf32, #tpu.memory_space<vmem>>, vector<8x32xf32>
      %c0_11 = arith.constant 0 : index
      %c0_12 = arith.constant 0 : index
      %13 = vector.load %arg6[%c0_11, %c0_12] : memref<8x1xf32, #tpu.memory_space<vmem>>, vector<8x1xf32>
      %14 = vector.broadcast %13 : vector<8x1xf32> to vector<8x32xf32>
      %15 = arith.mulf %12, %14 : vector<8x32xf32>
      %c0_13 = arith.constant 0 : index
      %c0_14 = arith.constant 0 : index
      %16 = vector.load %arg4[%c0_13, %c0_14] : memref<32x128xf32, #tpu.memory_space<vmem>>, vector<32x128xf32>
      %cst_15 = arith.constant dense<0.000000e+00> : vector<8x128xf32>
      %17 = tpu.matmul %15, %16, %cst_15 {dimension_numbers = #tpu.dot_dimension_numbers<[1], [0], [0], [1], [0, 0, 1, 1], [], []>} : vector<8x32xf32>, vector<32x128xf32>, vector<8x128xf32> -> vector<8x128xf32>
      %c0_16 = arith.constant 0 : index
      %c0_17 = arith.constant 0 : index
      %18 = vector.load %arg5[%c0_16, %c0_17] : memref<1x128xf32, #tpu.memory_space<vmem>>, vector<1x128xf32>
      %19 = vector.broadcast %18 : vector<1x128xf32> to vector<8x128xf32>
      %20 = arith.addf %17, %19 : vector<8x128xf32>
      %c0_18 = arith.constant 0 : index
      %c0_19 = arith.constant 0 : index
      %21 = vector.load %arg7[%c0_18, %c0_19] : memref<8x128xf32, #tpu.memory_space<vmem>>, vector<8x128xf32>
      tpu.vector_store %arg7[%c0_18, %c0_19], %20 {strides = array<i32>} : memref<8x128xf32, #tpu.memory_space<vmem>>, vector<8x128xf32>,
    } else {
    }
    return
  }
  func.func @transform_0(%arg0: i32, %arg1: i32) -> (i32, i32) {
    %c0_i32 = arith.constant 0 : i32
    return %arg0, %arg1 : i32, i32
  }
  func.func @transform_1(%arg0: i32, %arg1: i32) -> (i32, i32) {
    %c0_i32 = arith.constant 0 : i32
    %c0_i32_0 = arith.constant 0 : i32
    return %arg1, %c0_i32 : i32, i32
  }
  func.func @transform_2(%arg0: i32, %arg1: i32) -> (i32, i32) {
    %c0_i32 = arith.constant 0 : i32
    %c0_i32_0 = arith.constant 0 : i32
    %c0_i32_1 = arith.constant 0 : i32
    return %c0_i32, %c0_i32_0 : i32, i32
  }
  func.func @transform_3(%arg0: i32, %arg1: i32) -> (i32, i32) {
    %c0_i32 = arith.constant 0 : i32
    %c0_i32_0 = arith.constant 0 : i32
    %c0_i32_1 = arith.constant 0 : i32
    return %c0_i32, %c0_i32_0 : i32, i32
  }
  func.func @transform_4(%arg0: i32, %arg1: i32) -> (i32, i32) {
    %c0_i32 = arith.constant 0 : i32
    %c0_i32_0 = arith.constant 0 : i32
    return %arg0, %c0_i32 : i32, i32
  }
  func.func @transform_5(%arg0: i32, %arg1: i32) -> (i32, i32) {
    %c0_i32 = arith.constant 0 : i32
    %c0_i32_0 = arith.constant 0 : i32
    return %arg0, %c0_i32 : i32, i32
  }
}

</mosaic_0001>

<llo_original>
// kernel: tpu_custom_call.1
$region0: #{tpu_custom_call.1}
  #allocation0 [shape = 'u32[]', space=smem, size = 0x4, offset = 0x4, fixed_abs, tag = 'smem constant byte address 0x4 - core index']
  #allocation1 [shape = 'u32[144,128]{1,0:T(1,128)}', space=vmem, size = 0x12000, scoped, tag = 'internal scratch']
  #allocation2 [shape = 'f32[8,32]{1,0:T(8,128)}', space=vmem, size = 0x1000, scoped, tag = 'scratch operand']
  %s0 = inlined_call_operand.vmem [shape: f32[8,256], index: 0, kind: input, shape index: {}]
  %s1 = inlined_call_operand.vmem [shape: f32[256,32], index: 1, kind: input, shape index: {}]
  %s2 = inlined_call_operand.vmem [shape: f32[32,128], index: 2, kind: input, shape index: {}]
  %s3 = inlined_call_operand.vmem [shape: f32[1,128], index: 3, kind: input, shape index: {}]
  %s4 = inlined_call_operand.vmem [shape: f32[8,1], index: 4, kind: input, shape index: {}]
  %s5 = inlined_call_operand.hbm [shape: f32[8,128], index: 5, kind: output, shape index: {}]
  %s6 = sld [smem:[#allocation0]]
  $region61: #{tpu_custom_call.1} parent=0
    _
  %s8 = ssub.s32 1, %s6
  %s9 = scalar_select 0, %s8, %s6
  $region1: #{tpu_custom_call.1} parent=0
    #allocation3 [shape = 'u8[4096]{0}', space=vmem, size = 0x1000, scoped, tag = 'output window, operand 0, single buffered']
    #allocation4 [shape = 's32[2]{0}', space=sflag, size = 0x8, scoped, tag = 'scoped memory for tpu_custom_call.1']
    %10 = vsyncpa [#allocation4], 0
    loop: start=0, step=1, limit=4
    $region2: #{tpu_custom_call.1} parent=1 // loop_pre_header
      _
    $region3: #{tpu_custom_call.1} parent=1 // loop_header
      %s12 = sphi 0, %s16
      %p13 = scmp.ge.s32.totalorder %s12, 4
      %s19 = sphi 0, %s31
      %s20 = sphi 0, %s27
      %s21 = sphi 0, %s19
      %s22 = sphi 0, %s20
      %s23 = sphi 0, %s21
      %s24 = sphi 0, %s22
      %s36 = sphi 0, %s38
      %s39 = sphi 0, %s36
      %s40 = sphi 0, %s39
      %s56 = sphi 0, %s40
      %s62 = sphi 0, %s64
      %s65 = sphi 0, %s62
      %s66 = sphi 0, %s65
      %s82 = sphi 0, %s66
      %s86 = sphi 0, %s86
      %s88 = sphi 0, %s86
      %s89 = sphi 0, %s88
      %s103 = sphi 0, %s89
      %s107 = sphi 0, %s107
      %s109 = sphi 0, %s107
      %s110 = sphi 0, %s109
      %s124 = sphi 0, %s110
      %s130 = sphi 0, %s132
      %s133 = sphi 0, %s130
      %s134 = sphi 0, %s133
      %s150 = sphi 0, %s134
      %s156 = sphi 0, %s158
      %s159 = sphi 0, %s156
      %s160 = sphi 0, %s159
      %s176 = sphi 0, %s160
    $region4: #{tpu_custom_call.1} parent=1 // loop_header_branch
      %15 = sbr.rel (%p13) target = $region8
    $region5: #{tpu_custom_call.1} parent=1 // loop_body
      %s17 = ssub.s32 %s12, 1
      %s18 = ssub.s32 %s12, 2
      %s25 = sadd.s32 1, %s20
      %p26 = scmp.ge.s32.totalorder %s25, 2
      %s27 = scalar_select %p26, 0, %s25
      %s28 = sadd.s32 1, %s19
      %s29 = scalar_select %p26, %s28, %s19
      %p30 = scmp.ge.s32.totalorder %s29, 1
      %s31 = scalar_select %p30, 0, %s29
      %s32 = ssub.s32 %s19, %s31
      %s33 = ssub.s32 %s20, %s27
      %s34 = sor.u32 %s32, %s33
      %p35 = scmp.eq.s32.totalorder %s34, 0
      %s37 = sadd.s32 %s36, 1
      %s38 = scalar_select %p35, %s36, %s37
      %p41 = pneg %p35
      %p42 = scmp.eq.s32.totalorder %s12, 1
      %p43 = por %p41, %p42
      %p44 = scmp.ne.s32.totalorder %s36, %s39
      %p45 = scmp.eq.s32.totalorder %s12, 0
      %p46 = por %p44, %p45
      %p47 = scmp.ne.s32.totalorder %s36, %s39
      %p48 = scmp.eq.s32.totalorder %s17, 1
      %p49 = por %p47, %p48
      %p50 = scmp.ne.s32.totalorder %s39, %s40
      %p51 = scmp.eq.s32.totalorder %s17, 0
      %p52 = por %p50, %p51
      %p53 = scmp.ne.s32.totalorder %s39, %s40
      %p54 = scmp.eq.s32.totalorder %s18, 1
      %p55 = por %p53, %p54
      %p57 = scmp.ne.s32.totalorder %s40, %s56
      %p58 = scmp.eq.s32.totalorder %s18, 0
      %p59 = por %p57, %p58
      %s60 = ssub.s32 %s20, %s27
      %p61 = scmp.eq.s32.totalorder %s60, 0
      %s63 = sadd.s32 %s62, 1
      %s64 = scalar_select %p61, %s62, %s63
      %p67 = pneg %p61
      %p68 = scmp.eq.s32.totalorder %s12, 1
      %p69 = por %p67, %p68
      %p70 = scmp.ne.s32.totalorder %s62, %s65
      %p71 = scmp.eq.s32.totalorder %s12, 0
      %p72 = por %p70, %p71
      %p73 = scmp.ne.s32.totalorder %s62, %s65
      %p74 = scmp.eq.s32.totalorder %s17, 1
      %p75 = por %p73, %p74
      %p76 = scmp.ne.s32.totalorder %s65, %s66
      %p77 = scmp.eq.s32.totalorder %s17, 0
      %p78 = por %p76, %p77
      %p79 = scmp.ne.s32.totalorder %s65, %s66
      %p80 = scmp.eq.s32.totalorder %s18, 1
      %p81 = por %p79, %p80
      %p83 = scmp.ne.s32.totalorder %s66, %s82
      %p84 = scmp.eq.s32.totalorder %s18, 0
      %p85 = por %p83, %p84
      %s87 = sadd.s32 %s86, 1
      %p90 = scmp.eq.s32.totalorder %s12, 1
      %p91 = scmp.ne.s32.totalorder %s86, %s88
      %p92 = scmp.eq.s32.totalorder %s12, 0
      %p93 = por %p91, %p92
      %p94 = scmp.ne.s32.totalorder %s86, %s88
      %p95 = scmp.eq.s32.totalorder %s17, 1
      %p96 = por %p94, %p95
      %p97 = scmp.ne.s32.totalorder %s88, %s89
      %p98 = scmp.eq.s32.totalorder %s17, 0
      %p99 = por %p97, %p98
      %p100 = scmp.ne.s32.totalorder %s88, %s89
      %p101 = scmp.eq.s32.totalorder %s18, 1
      %p102 = por %p100, %p101
      %p104 = scmp.ne.s32.totalorder %s89, %s103
      %p105 = scmp.eq.s32.totalorder %s18, 0
      %p106 = por %p104, %p105
      %s108 = sadd.s32 %s107, 1
      %p111 = scmp.eq.s32.totalorder %s12, 1
      %p112 = scmp.ne.s32.totalorder %s107, %s109
      %p113 = scmp.eq.s32.totalorder %s12, 0
      %p114 = por %p112, %p113
      %p115 = scmp.ne.s32.totalorder %s107, %s109
      %p116 = scmp.eq.s32.totalorder %s17, 1
      %p117 = por %p115, %p116
      %p118 = scmp.ne.s32.totalorder %s109, %s110
      %p119 = scmp.eq.s32.totalorder %s17, 0
      %p120 = por %p118, %p119
      %p121 = scmp.ne.s32.totalorder %s109, %s110
      %p122 = scmp.eq.s32.totalorder %s18, 1
      %p123 = por %p121, %p122
      %p125 = scmp.ne.s32.totalorder %s110, %s124
      %p126 = scmp.eq.s32.totalorder %s18, 0
      %p127 = por %p125, %p126
      %s128 = ssub.s32 %s19, %s31
      %p129 = scmp.eq.s32.totalorder %s128, 0
      %s131 = sadd.s32 %s130, 1
      %s132 = scalar_select %p129, %s130, %s131
      %p135 = pneg %p129
      %p136 = scmp.eq.s32.totalorder %s12, 1
      %p137 = por %p135, %p136
      %p138 = scmp.ne.s32.totalorder %s130, %s133
      %p139 = scmp.eq.s32.totalorder %s12, 0
      %p140 = por %p138, %p139
      %p141 = scmp.ne.s32.totalorder %s130, %s133
      %p142 = scmp.eq.s32.totalorder %s17, 1
      %p143 = por %p141, %p142
      %p144 = scmp.ne.s32.totalorder %s133, %s134
      %p145 = scmp.eq.s32.totalorder %s17, 0
      %p146 = por %p144, %p145
      %p147 = scmp.ne.s32.totalorder %s133, %s134
      %p148 = scmp.eq.s32.totalorder %s18, 1
      %p149 = por %p147, %p148
      %p151 = scmp.ne.s32.totalorder %s134, %s150
      %p152 = scmp.eq.s32.totalorder %s18, 0
      %p153 = por %p151, %p152
      %s154 = ssub.s32 %s19, %s31
      %p155 = scmp.eq.s32.totalorder %s154, 0
      %s157 = sadd.s32 %s156, 1
      %s158 = scalar_select %p155, %s156, %s157
      %p161 = pneg %p155
      %p162 = scmp.eq.s32.totalorder %s12, 1
      %p163 = por %p161, %p162
      %p164 = scmp.ne.s32.totalorder %s156, %s159
      %p165 = scmp.eq.s32.totalorder %s12, 0
      %p166 = por %p164, %p165
      %p167 = scmp.ne.s32.totalorder %s156, %s159
      %p168 = scmp.eq.s32.totalorder %s17, 1
      %p169 = por %p167, %p168
      %p170 = scmp.ne.s32.totalorder %s159, %s160
      %p171 = scmp.eq.s32.totalorder %s17, 0
      %p172 = por %p170, %p171
      %p173 = scmp.ne.s32.totalorder %s159, %s160
      %p174 = scmp.eq.s32.totalorder %s18, 1
      %p175 = por %p173, %p174
      %p177 = scmp.ne.s32.totalorder %s160, %s176
      %p178 = scmp.eq.s32.totalorder %s18, 0
      %p179 = por %p177, %p178
      %p180 = scmp.le.s32.totalorder 1, %s12
      %p181 = scmp.lt.s32.totalorder %s12, 3
      %p182 = pnand %p180, %p181
      %p183 = pneg %p182
      // Predicated region
      $region9: #{tpu_custom_call.1} parent=5 // pred_check
        _
      $region10: #{tpu_custom_call.1} parent=5 // pred_check_branch
        %185 = sbr.rel (%p182) target = $region12
      $region11: #{tpu_custom_call.1} parent=5 // pred_region
        %s186 = ssub.s32 %s12, 1
        // Predicated region
        $region13: #{tpu_custom_call.1} parent=11 // pred_check
          %p187 = pneg %p99
        $region14: #{tpu_custom_call.1} parent=11 // pred_check_branch
          %189 = sbr.rel (%p187) target = $region16
        $region15: #{tpu_custom_call.1} parent=11 // pred_region
          _
        $region16: #{tpu_custom_call.1} parent=11 // pred_fallthru
          _
        // Predicated region
        $region17: #{tpu_custom_call.1} parent=11 // pred_check
          %p190 = pneg %p120
        $region18: #{tpu_custom_call.1} parent=11 // pred_check_branch
          %192 = sbr.rel (%p190) target = $region20
        $region19: #{tpu_custom_call.1} parent=11 // pred_region
          _
        $region20: #{tpu_custom_call.1} parent=11 // pred_fallthru
          _
        // Predicated region
        $region21: #{tpu_custom_call.1} parent=11 // pred_check
          %p193 = pneg %p146
        $region22: #{tpu_custom_call.1} parent=11 // pred_check_branch
          %195 = sbr.rel (%p193) target = $region24
        $region23: #{tpu_custom_call.1} parent=11 // pred_region
          %p196 = scmp.lt.s32.totalorder %s21, 0
          %s197 = scalar_select %p196, %s21, 0
          %s198 = smul.addr %s197, 8
          %s199 = scalar_lea.vmem %s4, %s198
        $region24: #{tpu_custom_call.1} parent=11 // pred_fallthru
          _
      $region12: #{tpu_custom_call.1} parent=5 // pred_fallthru
        _
      %p200 = scmp.lt.s32.totalorder %s12, 2
      // Predicated region
      $region25: #{tpu_custom_call.1} parent=5 // pred_check
        %p201 = pneg %p200
      $region26: #{tpu_custom_call.1} parent=5 // pred_check_branch
        %203 = sbr.rel (%p201) target = $region28
      $region27: #{tpu_custom_call.1} parent=5 // pred_region
        // Predicated region
        $region29: #{tpu_custom_call.1} parent=27 // pred_check
          %p204 = pneg %p46
        $region30: #{tpu_custom_call.1} parent=27 // pred_check_branch
          %206 = sbr.rel (%p204) target = $region32
        $region31: #{tpu_custom_call.1} parent=27 // pred_region
          %p207 = scmp.lt.s32.totalorder %s19, 0
          %s208 = scalar_select %p207, %s19, 0
          %p209 = scmp.lt.s32.totalorder %s20, 1
          %s210 = scalar_select %p209, %s20, 1
          %s211 = smul.addr %s208, 2
          %s212 = sadd.s32 %s210, %s211
          %s213 = smul.addr %s212, 8
          %s214 = scalar_lea.vmem %s0, %s213
        $region32: #{tpu_custom_call.1} parent=27 // pred_fallthru
          _
        // Predicated region
        $region33: #{tpu_custom_call.1} parent=27 // pred_check
          %p215 = pneg %p72
        $region34: #{tpu_custom_call.1} parent=27 // pred_check_branch
          %217 = sbr.rel (%p215) target = $region36
        $region35: #{tpu_custom_call.1} parent=27 // pred_region
          %s218 = smul.u32 16, %s20
          %p219 = scmp.lt.s32.totalorder %s218, 31
          %s220 = scalar_select %p219, %s218, 31
          %s221 = smul.addr %s220, 8
          %s222 = scalar_lea.vmem %s1, %s221
          %s223 = smul.u32 16, %s20
        $region36: #{tpu_custom_call.1} parent=27 // pred_fallthru
          _
      $region28: #{tpu_custom_call.1} parent=5 // pred_fallthru
        _
      %p224 = scmp.le.s32.totalorder 1, %s12
      %p225 = scmp.lt.s32.totalorder %s12, 3
      %p226 = pnand %p224, %p225
      %p227 = pneg %p226
      // Predicated region
      $region37: #{tpu_custom_call.1} parent=5 // pred_check
        _
      $region38: #{tpu_custom_call.1} parent=5 // pred_check_branch
        %229 = sbr.rel (%p226) target = $region40
      $region39: #{tpu_custom_call.1} parent=5 // pred_region
        %s230 = ssub.s32 %s12, 1
        %p231 = scmp.lt.s32.totalorder %s21, 0
        %s232 = scalar_select %p231, %s21, 0
        %p233 = scmp.lt.s32.totalorder %s22, 1
        %s234 = scalar_select %p233, %s22, 1
        %s235 = smul.addr %s232, 2
        %s236 = sadd.s32 %s234, %s235
        %s237 = smul.addr %s236, 8
        %s238 = scalar_lea.vmem %s0, %s237
        %p239 = pneg %p52
        %p240 = pneg %p49
        %s241 = smul.u32 16, %s22
        %p242 = scmp.lt.s32.totalorder %s241, 31
        %s243 = scalar_select %p242, %s241, 31
        %s244 = smul.addr %s243, 8
        %s245 = scalar_lea.vmem %s1, %s244
        %p246 = pneg %p78
        %p247 = pneg %p75
        %p248 = pneg %p99
        %p249 = pneg %p96
        %p250 = pneg %p120
        %p251 = pneg %p117
        %p252 = scmp.lt.s32.totalorder %s21, 0
        %s253 = scalar_select %p252, %s21, 0
        %s254 = smul.addr %s253, 8
        %s255 = scalar_lea.vmem %s4, %s254
        %p256 = pneg %p146
        %p257 = pneg %p143
        %p258 = pneg %p172
        %p259 = pneg %p169
        %p260 = scmp.lt.s32.totalorder %s21, 0
        %s261 = scalar_select %p260, %s21, 0
        %p262 = scmp.lt.s32.totalorder %s22, 1
        %s263 = scalar_select %p262, %s22, 1
        %s264 = smul.addr %s261, 2
        %s265 = sadd.s32 %s263, %s264
        %s266 = smul.addr %s265, 8
        %s267 = scalar_lea.vmem %s0, %s266
        %s268 = smul.u32 16, %s22
        %p269 = scmp.lt.s32.totalorder %s268, 31
        %s270 = scalar_select %p269, %s268, 31
        %s271 = smul.addr %s270, 8
        %s272 = scalar_lea.vmem %s1, %s271
        %s273 = smul.u32 16, %s22
        %p274 = scmp.lt.s32.totalorder %s21, 0
        %s275 = scalar_select %p274, %s21, 0
        %s276 = smul.addr %s275, 8
        %s277 = scalar_lea.vmem %s4, %s276
        %p278 = scmp.eq.s32.totalorder %s22, 0
        // Predicated region
        $region41: #{tpu_custom_call.1} parent=39 // pred_check
          %p279 = pneg %p278
        $region42: #{tpu_custom_call.1} parent=39 // pred_check_branch
          %281 = sbr.rel (%p279) target = $region44
        $region43: #{tpu_custom_call.1} parent=39 // pred_region
          %vm282 = vcmask 261120
          %283 = vst.msk [vmem:[#allocation2] sm:$0xff] %vm282, 0.0
        $region44: #{tpu_custom_call.1} parent=39 // pred_fallthru
          _
        %v284 = vld [vmem:[#allocation2] sm:$0xff]
        %v285 = vld [vmem:[%s267] sm:$0xff]
        %v286 = vld [vmem:[%s272] sm:$0xff]
        %v287 = vld [vmem:[%s272 + $0x8] sm:$0xff]
        %v288 = vld [vmem:[%s272 + $0x10] sm:$0xff]
        %v289 = vld [vmem:[%s272 + $0x18] sm:$0xff]
        %v290 = vld [vmem:[%s272 + $0x20] sm:$0xff]
        %v291 = vld [vmem:[%s272 + $0x28] sm:$0xff]
        %v292 = vld [vmem:[%s272 + $0x30] sm:$0xff]
        %v293 = vld [vmem:[%s272 + $0x38] sm:$0xff]
        %v294 = vld [vmem:[%s272 + $0x40] sm:$0xff]
        %v295 = vld [vmem:[%s272 + $0x48] sm:$0xff]
        %v296 = vld [vmem:[%s272 + $0x50] sm:$0xff]
        %v297 = vld [vmem:[%s272 + $0x58] sm:$0xff]
        %v298 = vld [vmem:[%s272 + $0x60] sm:$0xff]
        %v299 = vld [vmem:[%s272 + $0x68] sm:$0xff]
        %v300 = vld [vmem:[%s272 + $0x70] sm:$0xff]
        %v301 = vld [vmem:[%s272 + $0x78] sm:$0xff]
        %302 = vmatprep.subr.mxu0 0.0
        %303 = vmatpush1.msra.mxu0 %v301
        %304 = vmatprep.subr.mxu0 0.0
        %305 = vmatpush1.msra.mxu0 %v300
        %306 = vmatprep.subr.mxu0 0.0
        %307 = vmatpush1.msra.mxu0 %v299
        %308 = vmatprep.subr.mxu0 0.0
        %309 = vmatpush1.msra.mxu0 %v298
        %310 = vmatprep.subr.mxu0 0.0
        %311 = vmatpush1.msra.mxu0 %v297
        %312 = vmatprep.subr.mxu0 0.0
        %313 = vmatpush1.msra.mxu0 %v296
        %314 = vmatprep.subr.mxu0 0.0
        %315 = vmatpush1.msra.mxu0 %v295
        %316 = vmatprep.subr.mxu0 0.0
        %317 = vmatpush1.msra.mxu0 %v294
        %318 = vmatprep.subr.mxu0 0.0
        %319 = vmatpush1.msra.mxu0 %v293
        %320 = vmatprep.subr.mxu0 0.0
        %321 = vmatpush1.msra.mxu0 %v292
        %322 = vmatprep.subr.mxu0 0.0
        %323 = vmatpush1.msra.mxu0 %v291
        %324 = vmatprep.subr.mxu0 0.0
        %325 = vmatpush1.msra.mxu0 %v290
        %326 = vmatprep.subr.mxu0 0.0
        %327 = vmatpush1.msra.mxu0 %v289
        %328 = vmatprep.subr.mxu0 0.0
        %329 = vmatpush1.msra.mxu0 %v288
        %330 = vmatprep.subr.mxu0 0.0
        %331 = vmatpush1.msra.mxu0 %v287
        %332 = vmatprep.subr.mxu0 0.0
        %333 = vmatpush1.msra.mxu0 %v286
        %334 = vmatprep.subr.mxu0 0.0
        %335 = vmatpush2.msra.mxu0 0.0
        %336 = vmatprep.subr.mxu0 0.0
        %337 = vmatpush2.msra.mxu0 0.0
        %338 = vmatprep.subr.mxu0 0.0
        %339 = vmatpush2.msra.mxu0 0.0
        %340 = vmatprep.subr.mxu0 0.0
        %341 = vmatpush2.msra.mxu0 0.0
        %342 = vmatprep.subr.mxu0 0.0
        %343 = vmatpush2.msra.mxu0 0.0
        %344 = vmatprep.subr.mxu0 0.0
        %345 = vmatpush2.msra.mxu0 0.0
        %346 = vmatprep.subr.mxu0 0.0
        %347 = vmatpush2.msra.mxu0 0.0
        %348 = vmatprep.subr.mxu0 0.0
        %349 = vmatpush2.msra.mxu0 0.0
        %350 = vmatprep.subr.mxu0 0.0
        %351 = vmatpush2.msra.mxu0 0.0
        %352 = vmatprep.subr.mxu0 0.0
        %353 = vmatpush2.msra.mxu0 0.0
        %354 = vmatprep.subr.mxu0 0.0
        %355 = vmatpush2.msra.mxu0 0.0
        %356 = vmatprep.subr.mxu0 0.0
        %357 = vmatpush2.msra.mxu0 0.0
        %358 = vmatprep.subr.mxu0 0.0
        %359 = vmatpush2.msra.mxu0 0.0
        %360 = vmatprep.subr.mxu0 0.0
        %361 = vmatpush2.msra.mxu0 0.0
        %362 = vmatprep.subr.mxu0 0.0
        %363 = vmatpush2.msra.mxu0 0.0
        %364 = vmatprep.subr.mxu0 0.0
        %365 = vmatpush2.msra.mxu0 0.0
        %366 = vmatprep.mubr.f32.mxu0 0.0
        %367 = vmatmul.mubr.f32.gmra.mxu0 %v285
        %v368 = vpop.f32.mrf.mxu0
        %v369 = vadd.f32 0.0, %v368
        %v370 = vpop.f32.mrf.mxu0
        %371 = vdwg.mxu0
        %v372 = vadd.f32 %v284, %v369
        %vm373 = vcmask 261120
        %374 = vst.msk [vmem:[#allocation2] sm:$0xff] %vm373, %v372
        %p375 = scmp.eq.s32.totalorder %s22, 1
        // Predicated region
        $region45: #{tpu_custom_call.1} parent=39 // pred_check
          %p376 = pneg %p375
        $region46: #{tpu_custom_call.1} parent=39 // pred_check_branch
          %378 = sbr.rel (%p376) target = $region48
        $region47: #{tpu_custom_call.1} parent=39 // pred_region
          %v379 = vld [vmem:[#allocation2] sm:$0xff]
          %v380 = vld [vmem:[%s277] sm:$0xff]
          %382 = vset.pattern.permute.xlu0 0
          %383 = vperm.xlu0 %382, %v380
          %v384 = vpop.permute.xlu0 %383
          %v386 = vmul.f32 %v379, %v384
          %v387 = vld [vmem:[%s2] sm:$0xff]
          %v388 = vld [vmem:[%s2 + $0x8] sm:$0xff]
          %v389 = vld [vmem:[%s2 + $0x10] sm:$0xff]
          %v390 = vld [vmem:[%s2 + $0x18] sm:$0xff]
          %v391 = vld [vmem:[%s3] sm:$0x1]
          %v393 = vlaneseq
          %v394 = vshrl.u32 %v393, 7
          %v395 = vsub.s32 0, %v394
          %v396 = vrot.slane %v391, %v395
          %v399 = vsel %vm373, %v386, 0
          %401 = vmatprep.subr.mxu0 0.0
          %402 = vmatpush1.msra.mxu0 0.0
          %403 = vmatprep.subr.mxu0 0.0
          %404 = vmatpush1.msra.mxu0 0.0
          %405 = vmatprep.subr.mxu0 0.0
          %406 = vmatpush1.msra.mxu0 0.0
          %407 = vmatprep.subr.mxu0 0.0
          %408 = vmatpush1.msra.mxu0 0.0
          %409 = vmatprep.subr.mxu0 0.0
          %410 = vmatpush1.msra.mxu0 0.0
          %411 = vmatprep.subr.mxu0 0.0
          %412 = vmatpush1.msra.mxu0 0.0
          %413 = vmatprep.subr.mxu0 0.0
          %414 = vmatpush1.msra.mxu0 0.0
          %415 = vmatprep.subr.mxu0 0.0
          %416 = vmatpush1.msra.mxu0 0.0
          %417 = vmatprep.subr.mxu0 0.0
          %418 = vmatpush1.msra.mxu0 0.0
          %419 = vmatprep.subr.mxu0 0.0
          %420 = vmatpush1.msra.mxu0 0.0
          %421 = vmatprep.subr.mxu0 0.0
          %422 = vmatpush1.msra.mxu0 0.0
          %423 = vmatprep.subr.mxu0 0.0
          %424 = vmatpush1.msra.mxu0 0.0
          %425 = vmatprep.subr.mxu0 0.0
          %426 = vmatpush1.msra.mxu0 %v390
          %427 = vmatprep.subr.mxu0 0.0
          %428 = vmatpush1.msra.mxu0 %v389
          %429 = vmatprep.subr.mxu0 0.0
          %430 = vmatpush1.msra.mxu0 %v388
          %431 = vmatprep.subr.mxu0 0.0
          %432 = vmatpush1.msra.mxu0 %v387
          %433 = vmatprep.subr.mxu0 0.0
          %434 = vmatpush2.msra.mxu0 0.0
          %435 = vmatprep.subr.mxu0 0.0
          %436 = vmatpush2.msra.mxu0 0.0
          %437 = vmatprep.subr.mxu0 0.0
          %438 = vmatpush2.msra.mxu0 0.0
          %439 = vmatprep.subr.mxu0 0.0
          %440 = vmatpush2.msra.mxu0 0.0
          %441 = vmatprep.subr.mxu0 0.0
          %442 = vmatpush2.msra.mxu0 0.0
          %443 = vmatprep.subr.mxu0 0.0
          %444 = vmatpush2.msra.mxu0 0.0
          %445 = vmatprep.subr.mxu0 0.0
          %446 = vmatpush2.msra.mxu0 0.0
          %447 = vmatprep.subr.mxu0 0.0
          %448 = vmatpush2.msra.mxu0 0.0
          %449 = vmatprep.subr.mxu0 0.0
          %450 = vmatpush2.msra.mxu0 0.0
          %451 = vmatprep.subr.mxu0 0.0
          %452 = vmatpush2.msra.mxu0 0.0
          %453 = vmatprep.subr.mxu0 0.0
          %454 = vmatpush2.msra.mxu0 0.0
          %455 = vmatprep.subr.mxu0 0.0
          %456 = vmatpush2.msra.mxu0 0.0
          %457 = vmatprep.subr.mxu0 0.0
          %458 = vmatpush2.msra.mxu0 0.0
          %459 = vmatprep.subr.mxu0 0.0
          %460 = vmatpush2.msra.mxu0 0.0
          %461 = vmatprep.subr.mxu0 0.0
          %462 = vmatpush2.msra.mxu0 0.0
          %463 = vmatprep.subr.mxu0 0.0
          %464 = vmatpush2.msra.mxu0 0.0
          %465 = vmatprep.mubr.f32.mxu0 0.0
          %466 = vmatmul.mubr.f32.gmra.mxu0 %v399
          %v467 = vpop.f32.mrf.mxu0
          %v468 = vadd.f32 %v396, %v467
          %v469 = vpop.f32.mrf.mxu0
          %470 = vdwg.mxu0
          %471 = vst [vmem:[#allocation3] sm:$0xff] %v468
        $region48: #{tpu_custom_call.1} parent=39 // pred_fallthru
          _
        // Predicated region
        $region49: #{tpu_custom_call.1} parent=39 // pred_check
          %p472 = pneg %p169
        $region50: #{tpu_custom_call.1} parent=39 // pred_check_branch
          %474 = sbr.rel (%p472) target = $region52
        $region51: #{tpu_custom_call.1} parent=39 // pred_region
          %s476 = ssub.s32 128, 128
          %477 = vsyncadd [#allocation4], %s476
          %s478 = smul.addr %s21, 128
          %s479 = scalar_lea.hbm %s5, %s478
          %s481 = sshll.u32 [#allocation3], 4
          %s482 = int_to_ptr.vmem [resolvable:$true] %s481
          %484 = dma.vmem_to_hbm [thread:$0]  %s482, 128, %s479, [#allocation4]
        $region52: #{tpu_custom_call.1} parent=39 // pred_fallthru
          _
        // Predicated region
        $region53: #{tpu_custom_call.1} parent=39 // pred_check
          %p485 = pneg %p169
        $region54: #{tpu_custom_call.1} parent=39 // pred_check_branch
          %487 = sbr.rel (%p485) target = $region56
        $region55: #{tpu_custom_call.1} parent=39 // pred_region
          %488 = dma.done [#allocation4], 128
        $region56: #{tpu_custom_call.1} parent=39 // pred_fallthru
          _
      $region40: #{tpu_custom_call.1} parent=5 // pred_fallthru
        _
      %p489 = scmp.le.s32.totalorder 2, %s12
      // Predicated region
      $region57: #{tpu_custom_call.1} parent=5 // pred_check
        %p490 = pneg %p489
      $region58: #{tpu_custom_call.1} parent=5 // pred_check_branch
        %492 = sbr.rel (%p490) target = $region60
      $region59: #{tpu_custom_call.1} parent=5 // pred_region
        %s493 = ssub.s32 %s12, 2
      $region60: #{tpu_custom_call.1} parent=5 // pred_fallthru
        _
    $region6: #{tpu_custom_call.1} parent=1 // loop_footer
      %s16 = sadd.s32 1, %s12
    $region7: #{tpu_custom_call.1} parent=1 // loop_footer_branch
      %11 = sbr.rel target = $region3
    $region8: #{tpu_custom_call.1} parent=1 // loop_exit
      _
    %494 = vsyncpa [#allocation4], 1
    %s495 = scalar_lea.sflag [#allocation4], 1
    %496 = vsyncpa %s495, 1

</llo_original>
